<compile_context>
chip_gen: v5e
topology: v5e:2x2
jax: 0.10.0
libtpu: 0.0.40
codegen_flags: <defaults>
</compile_context>

<pallas_src>
import functools

import jax
import jax.numpy as jnp
from jax.experimental import pallas as pl
from jax.experimental.pallas import tpu as pltpu

MOMENTUM = 0.1
EPSILON = 1e-5

_LANE = 128
_SUBLANE = 8
_VMEM_BUDGET = 48 * 1024 * 1024      # budget for double-buffered blocks (fits v7x)
_VMEM_LIMIT_CAP = 56 * 1024 * 1024   # never request more than this from Mosaic
_VMEM_LIMIT_FLOOR = 32 * 1024 * 1024


def _round_up(a, b):
    return -(-a // b) * b


def _vmem_limit(buffer_bytes):
    return int(min(_VMEM_LIMIT_CAP,
                   max(buffer_bytes + (2 << 20), _VMEM_LIMIT_FLOOR)))


def _pad_cols(a, f_pad, value):
    f = a.shape[-1]
    if f_pad == f:
        return a
    pad = [(0, 0)] * (a.ndim - 1) + [(0, f_pad - f)]
    return jnp.pad(a, pad, constant_values=value)


# --------------------------------------------------------------------------
# Kernels
# --------------------------------------------------------------------------
def _bn_single_pass_kernel(x_ref, w_ref, b_ref, rm_ref, rv_ref,
                           y_ref, nrm_ref, nrv_ref):
    """All of N resident: stats + normalize + running-stat update in one pass."""
    x = x_ref[...].astype(jnp.float32)                      # [N, tf]
    mean = jnp.mean(x, axis=0, keepdims=True)               # [1, tf]
    diff = x - mean
    var = jnp.mean(diff * diff, axis=0, keepdims=True)      # biased variance

    inv_std = jax.lax.rsqrt(var + EPSILON)                  # EUP rsqrt
    y = diff * inv_std * w_ref[...].astype(jnp.float32) + b_ref[...].astype(jnp.float32)
    y_ref[...] = y.astype(y_ref.dtype)

    rm = rm_ref[...].astype(jnp.float32)
    rv = rv_ref[...].astype(jnp.float32)
    nrm_ref[...] = ((1.0 - MOMENTUM) * rm + MOMENTUM * mean).astype(nrm_ref.dtype)
    nrv_ref[...] = ((1.0 - MOMENTUM) * rv + MOMENTUM * var).astype(nrv_ref.dtype)


def _bn_stats_kernel(x_ref, rm_ref, rv_ref,
                     mean_ref, var_ref, nrm_ref, nrv_ref,
                     sum_sc, sq_sc, *, n_rows, tile_n):
    """Pass 1 of the large-N path: accumulate sum / sumsq over N tiles."""
    ni = pl.program_id(1)                                   # reduction axis (last)

    @pl.when(ni == 0)
    def _():
        sum_sc[...] = jnp.zeros_like(sum_sc)
        sq_sc[...] = jnp.zeros_like(sq_sc)

    x = x_ref[...].astype(jnp.float32)                      # [tile_n, tf]
    if n_rows % tile_n != 0:                                # mask the ragged last tile
        rid = jax.lax.broadcasted_iota(jnp.int32, x.shape, 0) + ni * tile_n
        x = jnp.where(rid < n_rows, x, 0.0)
    sum_sc[...] += jnp.sum(x, axis=0, keepdims=True)
    sq_sc[...] += jnp.sum(x * x, axis=0, keepdims=True)

    @pl.when(ni == pl.num_programs(1) - 1)
    def _():
        inv_n = jnp.float32(1.0 / n_rows)
        mean = sum_sc[...] * inv_n
        var = jnp.maximum(sq_sc[...] * inv_n - mean * mean, 0.0)   # biased
        mean_ref[...] = mean.astype(mean_ref.dtype)
        var_ref[...] = var.astype(var_ref.dtype)
        rm = rm_ref[...].astype(jnp.float32)
        rv = rv_ref[...].astype(jnp.float32)
        nrm_ref[...] = ((1.0 - MOMENTUM) * rm + MOMENTUM * mean).astype(nrm_ref.dtype)
        nrv_ref[...] = ((1.0 - MOMENTUM) * rv + MOMENTUM * var).astype(nrv_ref.dtype)


def _bn_normalize_kernel(x_ref, mean_ref, var_ref, w_ref, b_ref, y_ref):
    """Normalize an (tile_n, tf) block with given per-feature mean/var."""
    x = x_ref[...].astype(jnp.float32)
    inv_std = jax.lax.rsqrt(var_ref[...].astype(jnp.float32) + EPSILON)
    y = ((x - mean_ref[...].astype(jnp.float32)) * inv_std
         * w_ref[...].astype(jnp.float32) + b_ref[...].astype(jnp.float32))
    y_ref[...] = y.astype(y_ref.dtype)


# --------------------------------------------------------------------------
# Host wrappers
# --------------------------------------------------------------------------
def _choose_tile_n(N, tf, x_item, batch_tile):
    # double-buffered x + y blocks + ~2 f32 intermediates per row of a tile
    per_row = tf * (4 * x_item + 2 * 4)
    tile_n = max(_SUBLANE, (_VMEM_BUDGET // per_row) // _SUBLANE * _SUBLANE)
    if batch_tile is not None:
        tile_n = max(_SUBLANE, (int(batch_tile) // _SUBLANE) * _SUBLANE)
    if tile_n >= N:
        tile_n = N          # full-extent batch block is always layout-legal
    return tile_n


def _normalize_call(xp, mean2, var2, w2, b2, N, F_pad, tf, tile_n, out_dtype):
    nf = F_pad // tf
    nn = pl.cdiv(N, tile_n)
    x_item = xp.dtype.itemsize

    row_spec = pl.BlockSpec((1, tf), lambda j, i: (0, j))
    x_spec = pl.BlockSpec((tile_n, tf), lambda j, i: (i, j))

    buf_bytes = tile_n * tf * (4 * x_item + 2 * 4) + 32 * tf * 4
    cost = pl.CostEstimate(
        flops=5 * N * F_pad,
        transcendentals=F_pad,
        bytes_accessed=2 * N * F_pad * x_item + 4 * F_pad * 4)

    return pl.pallas_call(
        _bn_normalize_kernel,
        out_shape=jax.ShapeDtypeStruct((N, F_pad), out_dtype),
        grid_spec=pltpu.PrefetchScalarGridSpec(
            num_scalar_prefetch=0,
            grid=(nf, nn),
            in_specs=[x_spec, row_spec, row_spec, row_spec, row_spec],
            out_specs=x_spec,
        ),
        compiler_params=pltpu.CompilerParams(
            dimension_semantics=("parallel", "parallel"),
            vmem_limit_bytes=_vmem_limit(buf_bytes)),
        cost_estimate=cost,
    )(xp, mean2, var2, w2, b2)


def my_batch_norm_1d(x, weights, biases, running_mean, running_var, *,
                     training=True, feature_tile=1024,
                     force_two_pass=False, batch_tile=None):
    """MyBatchNorm1d forward.

    x: [N, F].  weights/biases/running_*: [F].
    Returns (y, new_running_mean, new_running_var).
    `force_two_pass` / `batch_tile` are testing knobs for the large-N path.
    """
    N, F = x.shape
    x_item = x.dtype.itemsize

    F128 = _round_up(F, _LANE)
    desired_tf = max(_LANE, _round_up(int(feature_tile), _LANE))
    desired_tf = min(desired_tf, F128)

    # ---------------- eval mode: normalize with running stats ----------------
    if not training:
        tf = desired_tf
        tile_n = _choose_tile_n(N, tf, x_item, batch_tile)
        F_pad = _round_up(F, tf)
        xp = _pad_cols(x, F_pad, 0.0)
        w2 = _pad_cols(weights.reshape(1, F), F_pad, 1.0)
        b2 = _pad_cols(biases.reshape(1, F), F_pad, 0.0)
        rm2 = _pad_cols(running_mean.reshape(1, F), F_pad, 0.0)
        rv2 = _pad_cols(running_var.reshape(1, F), F_pad, 1.0)
        y = _normalize_call(xp, rm2, rv2, w2, b2, N, F_pad, tf, tile_n, x.dtype)
        return y[:, :F], running_mean, running_var

    # ---------------- training mode ----------------
    # Single-pass VMEM sizing: double-buffered x + y blocks plus ~3 f32
    # intermediate copies of the block, per lane column.
    per_col_single = N * (2 * x_item + 2 * x_item + 3 * 4)
    tf_cap_single = (_VMEM_BUDGET // per_col_single) // _LANE * _LANE
    use_single_pass = (not force_two_pass) and tf_cap_single >= _LANE

    if use_single_pass:
        tf = min(desired_tf, tf_cap_single)
        # Give v7x's two TensorCores at least two grid steps when tiles stay big.
        if F128 // tf < 2 and F128 >= 2 * 512:
            tf = _round_up(F128 // 2, _LANE)
        F_pad = _round_up(F, tf)

        xp = _pad_cols(x, F_pad, 0.0)
        w2 = _pad_cols(weights.reshape(1, F), F_pad, 1.0)
        b2 = _pad_cols(biases.reshape(1, F), F_pad, 0.0)
        rm2 = _pad_cols(running_mean.reshape(1, F), F_pad, 0.0)
        rv2 = _pad_cols(running_var.reshape(1, F), F_pad, 1.0)

        row_spec = pl.BlockSpec((1, tf), lambda j: (0, j))
        x_spec = pl.BlockSpec((N, tf), lambda j: (0, j))

        buf_bytes = N * tf * (4 * x_item + 3 * 4) + 16 * tf * 4
        cost = pl.CostEstimate(
            flops=8 * N * F_pad,
            transcendentals=F_pad,
            bytes_accessed=2 * N * F_pad * x_item + 6 * F_pad * 4)

        y, nrm, nrv = pl.pallas_call(
            _bn_single_pass_kernel,
            out_shape=(
                jax.ShapeDtypeStruct((N, F_pad), x.dtype),
                jax.ShapeDtypeStruct((1, F_pad), running_mean.dtype),
                jax.ShapeDtypeStruct((1, F_pad), running_var.dtype),
            ),
            grid_spec=pltpu.PrefetchScalarGridSpec(
                num_scalar_prefetch=0,
                grid=(F_pad // tf,),
                in_specs=[x_spec, row_spec, row_spec, row_spec, row_spec],
                out_specs=[x_spec, row_spec, row_spec],
            ),
            compiler_params=pltpu.CompilerParams(
                dimension_semantics=("parallel",),
                vmem_limit_bytes=_vmem_limit(buf_bytes)),
            cost_estimate=cost,
        )(xp, w2, b2, rm2, rv2)

        return y[:, :F], nrm[0, :F], nrv[0, :F]

    # -------- Two-pass path (large N): never needs all of N resident --------
    tf = desired_tf
    tile_n = _choose_tile_n(N, tf, x_item, batch_tile)
    F_pad = _round_up(F, tf)
    nf = F_pad // tf
    nn = pl.cdiv(N, tile_n)

    xp = _pad_cols(x, F_pad, 0.0)
    w2 = _pad_cols(weights.reshape(1, F), F_pad, 1.0)
    b2 = _pad_cols(biases.reshape(1, F), F_pad, 0.0)
    rm2 = _pad_cols(running_mean.reshape(1, F), F_pad, 0.0)
    rv2 = _pad_cols(running_var.reshape(1, F), F_pad, 1.0)

    row_spec = pl.BlockSpec((1, tf), lambda j, i: (0, j))
    x_spec = pl.BlockSpec((tile_n, tf), lambda j, i: (i, j))

    buf_bytes = tile_n * tf * (2 * x_item + 2 * 4) + 32 * tf * 4
    stats_cost = pl.CostEstimate(
        flops=4 * N * F_pad,
        transcendentals=0,
        bytes_accessed=N * F_pad * x_item + 8 * F_pad * 4)

    mean, var, nrm, nrv = pl.pallas_call(
        functools.partial(_bn_stats_kernel, n_rows=N, tile_n=tile_n),
        out_shape=(
            jax.ShapeDtypeStruct((1, F_pad), jnp.float32),
            jax.ShapeDtypeStruct((1, F_pad), jnp.float32),
            jax.ShapeDtypeStruct((1, F_pad), running_mean.dtype),
            jax.ShapeDtypeStruct((1, F_pad), running_var.dtype),
        ),
        grid_spec=pltpu.PrefetchScalarGridSpec(
            num_scalar_prefetch=0,
            grid=(nf, nn),                       # reduction axis (N) last
            in_specs=[x_spec, row_spec, row_spec],
            out_specs=[row_spec, row_spec, row_spec, row_spec],
            scratch_shapes=[pltpu.VMEM((1, tf), jnp.float32),
                            pltpu.VMEM((1, tf), jnp.float32)],
        ),
        compiler_params=pltpu.CompilerParams(
            dimension_semantics=("parallel", "arbitrary"),
            vmem_limit_bytes=_vmem_limit(buf_bytes)),
        cost_estimate=stats_cost,
    )(xp, rm2, rv2)

    y = _normalize_call(xp, mean, var, w2, b2, N, F_pad, tf, tile_n, x.dtype)
    return y[:, :F], nrm[0, :F], nrv[0, :F]


# --------------------------------------------------------------------------
# Demo / self-check
# --------------------------------------------------------------------------
def _reference(x, w, b, rm, rv):
    mean = x.mean(axis=0)
    var = ((x - mean) ** 2).mean(axis=0)        # biased, matches the module
    y = (x - mean) / jnp.sqrt(var + EPSILON) * w + b
    new_rm = (1 - MOMENTUM) * rm + MOMENTUM * mean
    new_rv = (1 - MOMENTUM) * rv + MOMENTUM * var
    return y, new_rm, new_rv


if __name__ == "__main__":
    key = jax.random.PRNGKey(0)

    # ---- Test 1: small natural shape, single-pass path ----
    N, F = 8, 256
    x = jax.random.normal(key, (N, F), dtype=jnp.float32)
    w = jnp.ones((F,), jnp.float32)
    b = jnp.zeros((F,), jnp.float32)
    rm = jnp.zeros((F,), jnp.float32)
    rv = jnp.ones((F,), jnp.float32)

    y, nrm, nrv = my_batch_norm_1d(x, w, b, rm, rv)
    jax.block_until_ready((y, nrm, nrv))
    y_ref, rm_ref, rv_ref = _reference(x, w, b, rm, rv)
    assert jnp.allclose(y, y_ref, atol=1e-5, rtol=1e-5)
    assert jnp.allclose(nrm, rm_ref, atol=1e-6, rtol=1e-6)
    assert jnp.allclose(nrv, rv_ref, atol=1e-6, rtol=1e-6)

    # ---- Test 2: F not a multiple of 128 (exercises lane padding) ----
    F2 = 192
    x2 = jax.random.normal(jax.random.PRNGKey(1), (N, F2), dtype=jnp.float32)
    w2 = jnp.ones((F2,), jnp.float32)
    b2 = jnp.zeros((F2,), jnp.float32)
    rm2 = jnp.zeros((F2,), jnp.float32)
    rv2 = jnp.ones((F2,), jnp.float32)
    y2, nrm2, nrv2 = my_batch_norm_1d(x2, w2, b2, rm2, rv2)
    jax.block_until_ready((y2, nrm2, nrv2))
    y2_ref, rm2_ref, rv2_ref = _reference(x2, w2, b2, rm2, rv2)
    assert jnp.allclose(y2, y2_ref, atol=1e-5, rtol=1e-5)
    assert jnp.allclose(nrm2, rm2_ref, atol=1e-6, rtol=1e-6)
    assert jnp.allclose(nrv2, rv2_ref, atol=1e-6, rtol=1e-6)

    # ---- Test 3: forced two-pass (large-N path) with ragged batch tiles ----
    N3, F3 = 20, 256
    x3 = jax.random.normal(jax.random.PRNGKey(2), (N3, F3), dtype=jnp.float32)
    y3, nrm3, nrv3 = my_batch_norm_1d(x3, w, b, rm, rv,
                                      force_two_pass=True,
                                      feature_tile=128, batch_tile=8)
    jax.block_until_ready((y3, nrm3, nrv3))
    y3_ref, rm3_ref, rv3_ref = _reference(x3, w, b, rm, rv)
    assert jnp.allclose(y3, y3_ref, atol=1e-4, rtol=1e-4)
    assert jnp.allclose(nrm3, rm3_ref, atol=1e-5, rtol=1e-5)
    assert jnp.allclose(nrv3, rv3_ref, atol=1e-4, rtol=1e-4)

    # ---- Test 4: eval mode (normalize with running stats, no update) ----
    y4, _, _ = my_batch_norm_1d(x, w, b, nrm, nrv, training=False)
    jax.block_until_ready(y4)
    y4_ref = (x - nrm) / jnp.sqrt(nrv + EPSILON) * w + b
    assert jnp.allclose(y4, y4_ref, atol=1e-5, rtol=1e-5)

    print("KERNEL_OK")
</pallas_src>

<mosaic_0001>
module attributes {stable_mosaic.version = 11 : i64} {
  func.func @_bn_single_pass_kernel(%arg0: i32, %arg1: memref<8x256xf32, #tpu.memory_space<vmem>>, %arg2: memref<1x256xf32, #tpu.memory_space<vmem>>, %arg3: memref<1x256xf32, #tpu.memory_space<vmem>>, %arg4: memref<1x256xf32, #tpu.memory_space<vmem>>, %arg5: memref<1x256xf32, #tpu.memory_space<vmem>>, %arg6: memref<8x256xf32, #tpu.memory_space<vmem>>, %arg7: memref<1x256xf32, #tpu.memory_space<vmem>>, %arg8: memref<1x256xf32, #tpu.memory_space<vmem>>) attributes {dimension_semantics = [#tpu.dimension_semantics<parallel>], iteration_bounds = array<i64: 1>, scalar_prefetch = 0 : i64, scratch_operands = 0 : i64, tpu.core_type = #tpu.core_type<tc>, window_params = [{transform_indices = @transform_0, window_bounds = array<i64: 8, 256>}, {transform_indices = @transform_1, window_bounds = array<i64: 1, 256>}, {transform_indices = @transform_2, window_bounds = array<i64: 1, 256>}, {transform_indices = @transform_3, window_bounds = array<i64: 1, 256>}, {transform_indices = @transform_4, window_bounds = array<i64: 1, 256>}, {transform_indices = @transform_5, window_bounds = array<i64: 8, 256>}, {transform_indices = @transform_6, window_bounds = array<i64: 1, 256>}, {transform_indices = @transform_7, window_bounds = array<i64: 1, 256>}]} {
    %c0 = arith.constant 0 : index
    %c0_0 = arith.constant 0 : index
    %0 = vector.load %arg1[%c0, %c0_0] : memref<8x256xf32, #tpu.memory_space<vmem>>, vector<8x256xf32>
    %cst = arith.constant dense<0.000000e+00> : vector<256xf32>
    %1 = vector.multi_reduction <add>, %0, %cst [0] : vector<8x256xf32> to vector<256xf32>
    %2 = vector.shape_cast %1 : vector<256xf32> to vector<1x256xf32>
    %cst_1 = arith.constant 8.000000e+00 : f32
    %3 = vector.broadcast %cst_1 : f32 to vector<1x256xf32>
    %4 = arith.divf %2, %3 : vector<1x256xf32>
    %5 = vector.broadcast %4 : vector<1x256xf32> to vector<8x256xf32>
    %6 = arith.subf %0, %5 : vector<8x256xf32>
    %7 = arith.mulf %6, %6 : vector<8x256xf32>
    %cst_2 = arith.constant dense<0.000000e+00> : vector<256xf32>
    %8 = vector.multi_reduction <add>, %7, %cst_2 [0] : vector<8x256xf32> to vector<256xf32>
    %9 = vector.shape_cast %8 : vector<256xf32> to vector<1x256xf32>
    %cst_3 = arith.constant 8.000000e+00 : f32
    %10 = vector.broadcast %cst_3 : f32 to vector<1x256xf32>
    %11 = arith.divf %9, %10 : vector<1x256xf32>
    %cst_4 = arith.constant 9.99999974E-6 : f32
    %12 = vector.broadcast %cst_4 : f32 to vector<1x256xf32>
    %13 = arith.addf %11, %12 : vector<1x256xf32>
    %14 = math.rsqrt %13 : vector<1x256xf32>
    %15 = vector.broadcast %14 : vector<1x256xf32> to vector<8x256xf32>
    %16 = arith.mulf %6, %15 : vector<8x256xf32>
    %c0_5 = arith.constant 0 : index
    %c0_6 = arith.constant 0 : index
    %17 = vector.load %arg2[%c0_5, %c0_6] : memref<1x256xf32, #tpu.memory_space<vmem>>, vector<1x256xf32>
    %18 = vector.broadcast %17 : vector<1x256xf32> to vector<8x256xf32>
    %19 = arith.mulf %16, %18 : vector<8x256xf32>
    %c0_7 = arith.constant 0 : index
    %c0_8 = arith.constant 0 : index
    %20 = vector.load %arg3[%c0_7, %c0_8] : memref<1x256xf32, #tpu.memory_space<vmem>>, vector<1x256xf32>
    %21 = vector.broadcast %20 : vector<1x256xf32> to vector<8x256xf32>
    %22 = arith.addf %19, %21 : vector<8x256xf32>
    %c0_9 = arith.constant 0 : index
    %c0_10 = arith.constant 0 : index
    %23 = vector.load %arg6[%c0_9, %c0_10] : memref<8x256xf32, #tpu.memory_space<vmem>>, vector<8x256xf32>
    tpu.vector_store %arg6[%c0_9, %c0_10], %22 {strides = array<i32>} : memref<8x256xf32, #tpu.memory_space<vmem>>, vector<8x256xf32>,
    %c0_11 = arith.constant 0 : index
    %c0_12 = arith.constant 0 : index
    %24 = vector.load %arg4[%c0_11, %c0_12] : memref<1x256xf32, #tpu.memory_space<vmem>>, vector<1x256xf32>
    %c0_13 = arith.constant 0 : index
    %c0_14 = arith.constant 0 : index
    %25 = vector.load %arg5[%c0_13, %c0_14] : memref<1x256xf32, #tpu.memory_space<vmem>>, vector<1x256xf32>
    %cst_15 = arith.constant 0.899999976 : f32
    %26 = vector.broadcast %cst_15 : f32 to vector<1x256xf32>
    %27 = arith.mulf %26, %24 : vector<1x256xf32>
    %cst_16 = arith.constant 1.000000e-01 : f32
    %28 = vector.broadcast %cst_16 : f32 to vector<1x256xf32>
    %29 = arith.mulf %28, %4 : vector<1x256xf32>
    %30 = arith.addf %27, %29 : vector<1x256xf32>
    %c0_17 = arith.constant 0 : index
    %c0_18 = arith.constant 0 : index
    %31 = vector.load %arg7[%c0_17, %c0_18] : memref<1x256xf32, #tpu.memory_space<vmem>>, vector<1x256xf32>
    tpu.vector_store %arg7[%c0_17, %c0_18], %30 {strides = array<i32>} : memref<1x256xf32, #tpu.memory_space<vmem>>, vector<1x256xf32>,
    %cst_19 = arith.constant 0.899999976 : f32
    %32 = vector.broadcast %cst_19 : f32 to vector<1x256xf32>
    %33 = arith.mulf %32, %25 : vector<1x256xf32>
    %cst_20 = arith.constant 1.000000e-01 : f32
    %34 = vector.broadcast %cst_20 : f32 to vector<1x256xf32>
    %35 = arith.mulf %34, %11 : vector<1x256xf32>
    %36 = arith.addf %33, %35 : vector<1x256xf32>
    %c0_21 = arith.constant 0 : index
    %c0_22 = arith.constant 0 : index
    %37 = vector.load %arg8[%c0_21, %c0_22] : memref<1x256xf32, #tpu.memory_space<vmem>>, vector<1x256xf32>
    tpu.vector_store %arg8[%c0_21, %c0_22], %36 {strides = array<i32>} : memref<1x256xf32, #tpu.memory_space<vmem>>, vector<1x256xf32>,
    return
  }
  func.func @transform_0(%arg0: i32) -> (i32, i32) {
    %c0_i32 = arith.constant 0 : i32
    %c0_i32_0 = arith.constant 0 : i32
    return %c0_i32, %arg0 : i32, i32
  }
  func.func @transform_1(%arg0: i32) -> (i32, i32) {
    %c0_i32 = arith.constant 0 : i32
    %c0_i32_0 = arith.constant 0 : i32
    return %c0_i32, %arg0 : i32, i32
  }
  func.func @transform_2(%arg0: i32) -> (i32, i32) {
    %c0_i32 = arith.constant 0 : i32
    %c0_i32_0 = arith.constant 0 : i32
    return %c0_i32, %arg0 : i32, i32
  }
  func.func @transform_3(%arg0: i32) -> (i32, i32) {
    %c0_i32 = arith.constant 0 : i32
    %c0_i32_0 = arith.constant 0 : i32
    return %c0_i32, %arg0 : i32, i32
  }
  func.func @transform_4(%arg0: i32) -> (i32, i32) {
    %c0_i32 = arith.constant 0 : i32
    %c0_i32_0 = arith.constant 0 : i32
    return %c0_i32, %arg0 : i32, i32
  }
  func.func @transform_5(%arg0: i32) -> (i32, i32) {
    %c0_i32 = arith.constant 0 : i32
    %c0_i32_0 = arith.constant 0 : i32
    return %c0_i32, %arg0 : i32, i32
  }
  func.func @transform_6(%arg0: i32) -> (i32, i32) {
    %c0_i32 = arith.constant 0 : i32
    %c0_i32_0 = arith.constant 0 : i32
    return %c0_i32, %arg0 : i32, i32
  }
  func.func @transform_7(%arg0: i32) -> (i32, i32) {
    %c0_i32 = arith.constant 0 : i32
    %c0_i32_0 = arith.constant 0 : i32
    return %c0_i32, %arg0 : i32, i32
  }
}

</mosaic_0001>

<llo_original>
// kernel: tpu_custom_call.1
$region0: #{tpu_custom_call.1}
  #allocation0 [shape = 'u32[]', space=smem, size = 0x4, offset = 0x4, fixed_abs, tag = 'smem constant byte address 0x4 - core index']
  #allocation1 [shape = 'u32[72,128]{1,0:T(1,128)}', space=vmem, size = 0x9000, scoped, tag = 'internal scratch']
  %s0 = inlined_call_operand.hbm [shape: f32[8,256], index: 0, kind: input, shape index: {}]
  %s1 = inlined_call_operand.hbm [shape: f32[1,256], index: 1, kind: input, shape index: {}]
  %s2 = inlined_call_operand.hbm [shape: f32[1,256], index: 2, kind: input, shape index: {}]
  %s3 = inlined_call_operand.vmem [shape: f32[1,256], index: 3, kind: input, shape index: {}]
  %s4 = inlined_call_operand.hbm [shape: f32[1,256], index: 4, kind: input, shape index: {}]
  %s5 = inlined_call_operand.hbm [shape: f32[8,256], index: 5, kind: output, shape index: {0}]
  %s6 = inlined_call_operand.hbm [shape: f32[1,256], index: 6, kind: output, shape index: {1}]
  %s7 = inlined_call_operand.hbm [shape: f32[1,256], index: 7, kind: output, shape index: {2}]
  %8 = xla_tuple %s5, %s6, %s7
  %s9 = sld [smem:[#allocation0]]
  $region62: #{tpu_custom_call.1} parent=0
    _
  %s11 = ssub.s32 1, %s9
  %s12 = scalar_select 0, %s11, %s9
  $region1: #{tpu_custom_call.1} parent=0
    #allocation2 [shape = 'u8[8192]{0}', space=vmem, size = 0x2000, scoped, tag = 'input window, operand 0, single buffered']
    #allocation3 [shape = 's32[1]{0}', space=sflag, size = 0x4, scoped, tag = 'scoped memory for tpu_custom_call.1']
    #allocation4 [shape = 's32[1]{0}', space=sflag, size = 0x4, scoped, tag = 'scoped memory for tpu_custom_call.1']
    #allocation5 [shape = 'u8[1024]{0}', space=vmem, size = 0x400, scoped, tag = 'input window, operand 1, single buffered']
    #allocation6 [shape = 's32[1]{0}', space=sflag, size = 0x4, scoped, tag = 'scoped memory for tpu_custom_call.1']
    #allocation7 [shape = 'u8[1024]{0}', space=vmem, size = 0x400, scoped, tag = 'input window, operand 2, single buffered']
    #allocation8 [shape = 'u8[1024]{0}', space=vmem, size = 0x400, scoped, tag = 'input window, operand 4, single buffered']
    #allocation9 [shape = 's32[1]{0}', space=sflag, size = 0x4, scoped, tag = 'scoped memory for tpu_custom_call.1']
    #allocation10 [shape = 'u8[8192]{0}', space=vmem, size = 0x2000, scoped, tag = 'output window, operand 0, single buffered']
    #allocation11 [shape = 'u8[1024]{0}', space=vmem, size = 0x400, scoped, tag = 'output window, operand 1, single buffered']
    #allocation12 [shape = 's32[1]{0}', space=sflag, size = 0x4, scoped, tag = 'scoped memory for tpu_custom_call.1']
    #allocation13 [shape = 'u8[1024]{0}', space=vmem, size = 0x400, scoped, tag = 'output window, operand 2, single buffered']
    %13 = vsyncpa [#allocation3], 0
    %14 = vsyncpa [#allocation6], 0
    %15 = vsyncpa [#allocation9], 0
    %16 = vsyncpa [#allocation4], 0
    %17 = vsyncpa [#allocation12], 0
    // Predicated region
    $region2: #{tpu_custom_call.1} parent=1 // pred_check
      _
    $region3: #{tpu_custom_call.1} parent=1 // pred_check_branch
      %19 = sbr.rel (0) target = $region5
    $region4: #{tpu_custom_call.1} parent=1 // pred_region
      %21 = vsyncadd [#allocation3], 0
      %s23 = sshll.u32 %s0, 4
      %s24 = int_to_ptr.hbm [resolvable:$true] %s23
      %s25 = sshll.u32 [#allocation2], 4
      %s26 = int_to_ptr.vmem [resolvable:$true] %s25
      %28 = dma.hbm_to_vmem [thread:$0]  %s24, 256, %s26, [#allocation3]
    $region5: #{tpu_custom_call.1} parent=1 // pred_fallthru
      _
    // Predicated region
    $region6: #{tpu_custom_call.1} parent=1 // pred_check
      _
    $region7: #{tpu_custom_call.1} parent=1 // pred_check_branch
      %30 = sbr.rel (0) target = $region9
    $region8: #{tpu_custom_call.1} parent=1 // pred_region
      %32 = vsyncadd [#allocation6], 0
      %s34 = sshll.u32 %s1, 4
      %s35 = int_to_ptr.hbm [resolvable:$true] %s34
      %s36 = sshll.u32 [#allocation5], 4
      %s37 = int_to_ptr.vmem [resolvable:$true] %s36
      %39 = dma.hbm_to_vmem [thread:$0]  %s35, 32, %s37, [#allocation6]
    $region9: #{tpu_custom_call.1} parent=1 // pred_fallthru
      _
    // Predicated region
    $region10: #{tpu_custom_call.1} parent=1 // pred_check
      _
    $region11: #{tpu_custom_call.1} parent=1 // pred_check_branch
      %41 = sbr.rel (0) target = $region13
    $region12: #{tpu_custom_call.1} parent=1 // pred_region
      %43 = vsyncadd [#allocation6], 0
      %s45 = sshll.u32 %s2, 4
      %s46 = int_to_ptr.hbm [resolvable:$true] %s45
      %s47 = sshll.u32 [#allocation7], 4
      %s48 = int_to_ptr.vmem [resolvable:$true] %s47
      %50 = dma.hbm_to_vmem [thread:$0]  %s46, 32, %s48, [#allocation6]
    $region13: #{tpu_custom_call.1} parent=1 // pred_fallthru
      _
    // Predicated region
    $region14: #{tpu_custom_call.1} parent=1 // pred_check
      _
    $region15: #{tpu_custom_call.1} parent=1 // pred_check_branch
      %52 = sbr.rel (0) target = $region17
    $region16: #{tpu_custom_call.1} parent=1 // pred_region
      _
    $region17: #{tpu_custom_call.1} parent=1 // pred_fallthru
      _
    // Predicated region
    $region18: #{tpu_custom_call.1} parent=1 // pred_check
      _
    $region19: #{tpu_custom_call.1} parent=1 // pred_check_branch
      %54 = sbr.rel (0) target = $region21
    $region20: #{tpu_custom_call.1} parent=1 // pred_region
      %56 = vsyncadd [#allocation9], 0
      %s58 = sshll.u32 %s4, 4
      %s59 = int_to_ptr.hbm [resolvable:$true] %s58
      %s60 = sshll.u32 [#allocation8], 4
      %s61 = int_to_ptr.vmem [resolvable:$true] %s60
      %63 = dma.hbm_to_vmem [thread:$0]  %s59, 32, %s61, [#allocation9]
    $region21: #{tpu_custom_call.1} parent=1 // pred_fallthru
      _
    // Predicated region
    $region22: #{tpu_custom_call.1} parent=1 // pred_check
      _
    $region23: #{tpu_custom_call.1} parent=1 // pred_check_branch
      %65 = sbr.rel (0) target = $region25
    $region24: #{tpu_custom_call.1} parent=1 // pred_region
      %67 = dma.done [#allocation3], 256
    $region25: #{tpu_custom_call.1} parent=1 // pred_fallthru
      _
    // Predicated region
    $region26: #{tpu_custom_call.1} parent=1 // pred_check
      _
    $region27: #{tpu_custom_call.1} parent=1 // pred_check_branch
      %69 = sbr.rel (0) target = $region29
    $region28: #{tpu_custom_call.1} parent=1 // pred_region
      %71 = dma.done [#allocation6], 32
    $region29: #{tpu_custom_call.1} parent=1 // pred_fallthru
      _
    // Predicated region
    $region30: #{tpu_custom_call.1} parent=1 // pred_check
      _
    $region31: #{tpu_custom_call.1} parent=1 // pred_check_branch
      %73 = sbr.rel (0) target = $region33
    $region32: #{tpu_custom_call.1} parent=1 // pred_region
      %75 = dma.done [#allocation6], 32
    $region33: #{tpu_custom_call.1} parent=1 // pred_fallthru
      _
    // Predicated region
    $region34: #{tpu_custom_call.1} parent=1 // pred_check
      _
    $region35: #{tpu_custom_call.1} parent=1 // pred_check_branch
      %77 = sbr.rel (0) target = $region37
    $region36: #{tpu_custom_call.1} parent=1 // pred_region
      %79 = dma.done [#allocation9], 32
    $region37: #{tpu_custom_call.1} parent=1 // pred_fallthru
      _
    %v80 = vld [vmem:[#allocation2] sm:$0xff]
    %v81 = vld [vmem:[#allocation2 + $0x8] sm:$0xff]
    %v82 = vrot.slane %v80, 4
    %v83 = vadd.f32 %v80, %v82
    %v84 = vrot.slane %v83, 2
    %v85 = vadd.f32 %v83, %v84
    %v86 = vrot.slane %v85, 1
    %v87 = vadd.f32 %v85, %v86
    %v88 = vrot.slane %v81, 4
    %v89 = vadd.f32 %v81, %v88
    %v90 = vrot.slane %v89, 2
    %v91 = vadd.f32 %v89, %v90
    %v92 = vrot.slane %v91, 1
    %v93 = vadd.f32 %v91, %v92
    %v94 = vrcp.pop 8.0
    %v95 = vmul.f32 8.0, %v94
    %v96 = vsub.f32 1.0, %v95
    %v97 = vmul.f32 %v94, %v96
    %v98 = vadd.f32 %v94, %v97
    %vm99 = vweird.f32 %v94
    %v100 = vsel %vm99, %v94, %v98
    %v101 = vmul.f32 %v87, %v100
    %v102 = vmul.f32 %v93, %v100
    %v103 = vsub.f32 %v80, %v101
    %v104 = vsub.f32 %v81, %v102
    %v105 = vmul.f32 %v103, %v103
    %v106 = vmul.f32 %v104, %v104
    %v107 = vrot.slane %v105, 4
    %v108 = vadd.f32 %v105, %v107
    %v109 = vrot.slane %v108, 2
    %v110 = vadd.f32 %v108, %v109
    %v111 = vrot.slane %v110, 1
    %v112 = vadd.f32 %v110, %v111
    %v113 = vrot.slane %v106, 4
    %v114 = vadd.f32 %v106, %v113
    %v115 = vrot.slane %v114, 2
    %v116 = vadd.f32 %v114, %v115
    %v117 = vrot.slane %v116, 1
    %v118 = vadd.f32 %v116, %v117
    %v119 = vmul.f32 %v112, %v100
    %v120 = vmul.f32 %v118, %v100
    %v121 = vadd.f32 %v119, 1e-05
    %v122 = vadd.f32 %v120, 1e-05
    %v123 = vrsqrt.pop %v121
    %v124 = vmul.f32 %v123, %v121
    %v125 = vmul.f32 %v124, %v123
    %v126 = vmul.f32 0.5, %v125
    %v127 = vsub.f32 1.5, %v126
    %v128 = vmul.f32 %v123, %v127
    %vm129 = vweird.f32 %v121
    %vm130 = vweird.f32 %v123
    %vm131 = vmor %vm129, %vm130
    %v132 = vsel %vm131, %v123, %v128
    %v133 = vrsqrt.pop %v122
    %v134 = vmul.f32 %v133, %v122
    %v135 = vmul.f32 %v134, %v133
    %v136 = vmul.f32 0.5, %v135
    %v137 = vsub.f32 1.5, %v136
    %v138 = vmul.f32 %v133, %v137
    %vm139 = vweird.f32 %v122
    %vm140 = vweird.f32 %v133
    %vm141 = vmor %vm139, %vm140
    %v142 = vsel %vm141, %v133, %v138
    %v143 = vmul.f32 %v103, %v132
    %v144 = vmul.f32 %v104, %v142
    %v145 = vld [vmem:[#allocation5] sm:$0x3]
    %v147 = vperm.slane %v145, 0
    %v148 = vperm.slane %v145, 1
    %v151 = vmul.f32 %v143, %v147
    %v152 = vmul.f32 %v144, %v148
    %v153 = vld [vmem:[#allocation7] sm:$0x3]
    %v155 = vperm.slane %v153, 0
    %v156 = vperm.slane %v153, 1
    %v159 = vadd.f32 %v151, %v155
    %v160 = vadd.f32 %v152, %v156
    %161 = vst [vmem:[#allocation10] sm:$0xff] %v159
    %162 = vst [vmem:[#allocation10 + $0x8] sm:$0xff] %v160
    %v163 = vld [vmem:[%s3] sm:$0x3]
    %v164 = vld [vmem:[#allocation8] sm:$0x3]
    %v165 = vmul.f32 %v163, 0.9
    %v166 = vmul.f32 %v101, 0.1
    %v167 = vmul.f32 %v102, 0.1
    %v170 = vrot.slane %v167, 7
    %vm171 = vcmask 1040384
    %v172 = vsel %vm171, %v166, %v170
    %v174 = vadd.f32 %v165, %v172
    %v175 = vlaneseq
    %vm176 = vcmp.ge.s32.totalorder %v175, 0
    %vm177 = vcmp.lt.s32.totalorder %v175, 256
    %vm178 = vmand %vm176, %vm177
    %179 = vst.msk [vmem:[#allocation11] sm:$0x3] %vm178, %v174
    %v180 = vmul.f32 %v164, 0.9
    %v181 = vmul.f32 %v119, 0.1
    %v182 = vmul.f32 %v120, 0.1
    %v185 = vrot.slane %v182, 7
    %v186 = vsel %vm171, %v181, %v185
    %v188 = vadd.f32 %v180, %v186
    %189 = vst.msk [vmem:[#allocation13] sm:$0x3] %vm178, %v188
    // Predicated region
    $region38: #{tpu_custom_call.1} parent=1 // pred_check
      _
    $region39: #{tpu_custom_call.1} parent=1 // pred_check_branch
      %191 = sbr.rel (0) target = $region41
    $region40: #{tpu_custom_call.1} parent=1 // pred_region
      %193 = vsyncadd [#allocation4], 0
      %s195 = sshll.u32 [#allocation10], 4
      %s196 = int_to_ptr.vmem [resolvable:$true] %s195
      %s197 = sshll.u32 %s5, 4
      %s198 = int_to_ptr.hbm [resolvable:$true] %s197
      %200 = dma.vmem_to_hbm [thread:$0]  %s196, 256, %s198, [#allocation4]
    $region41: #{tpu_custom_call.1} parent=1 // pred_fallthru
      _
    // Predicated region
    $region42: #{tpu_custom_call.1} parent=1 // pred_check
      _
    $region43: #{tpu_custom_call.1} parent=1 // pred_check_branch
      %202 = sbr.rel (0) target = $region45
    $region44: #{tpu_custom_call.1} parent=1 // pred_region
      %204 = vsyncadd [#allocation12], 0
      %s206 = sshll.u32 [#allocation11], 4
      %s207 = int_to_ptr.vmem [resolvable:$true] %s206
      %s208 = sshll.u32 %s6, 4
      %s209 = int_to_ptr.hbm [resolvable:$true] %s208
      %211 = dma.vmem_to_hbm [thread:$0]  %s207, 32, %s209, [#allocation12]
    $region45: #{tpu_custom_call.1} parent=1 // pred_fallthru
      _
    // Predicated region
    $region46: #{tpu_custom_call.1} parent=1 // pred_check
      _
    $region47: #{tpu_custom_call.1} parent=1 // pred_check_branch
      %213 = sbr.rel (0) target = $region49
    $region48: #{tpu_custom_call.1} parent=1 // pred_region
      %215 = vsyncadd [#allocation12], 0
      %s217 = sshll.u32 [#allocation13], 4
      %s218 = int_to_ptr.vmem [resolvable:$true] %s217
      %s219 = sshll.u32 %s7, 4
      %s220 = int_to_ptr.hbm [resolvable:$true] %s219
      %222 = dma.vmem_to_hbm [thread:$0]  %s218, 32, %s220, [#allocation12]
    $region49: #{tpu_custom_call.1} parent=1 // pred_fallthru
      _
    // Predicated region
    $region50: #{tpu_custom_call.1} parent=1 // pred_check
      _
    $region51: #{tpu_custom_call.1} parent=1 // pred_check_branch
      %224 = sbr.rel (0) target = $region53
    $region52: #{tpu_custom_call.1} parent=1 // pred_region
      %226 = dma.done [#allocation4], 256
    $region53: #{tpu_custom_call.1} parent=1 // pred_fallthru
      _
    // Predicated region
    $region54: #{tpu_custom_call.1} parent=1 // pred_check
      _
    $region55: #{tpu_custom_call.1} parent=1 // pred_check_branch
      %228 = sbr.rel (0) target = $region57
    $region56: #{tpu_custom_call.1} parent=1 // pred_region
      %230 = dma.done [#allocation12], 32
    $region57: #{tpu_custom_call.1} parent=1 // pred_fallthru
      _
    // Predicated region
    $region58: #{tpu_custom_call.1} parent=1 // pred_check
      _
    $region59: #{tpu_custom_call.1} parent=1 // pred_check_branch
      %232 = sbr.rel (0) target = $region61
    $region60: #{tpu_custom_call.1} parent=1 // pred_region
      %234 = dma.done [#allocation12], 32
    $region61: #{tpu_custom_call.1} parent=1 // pred_fallthru
      _
    %235 = vsyncpa [#allocation3], 1
    %236 = vsyncpa [#allocation6], 1
    %237 = vsyncpa [#allocation9], 1
    %238 = vsyncpa [#allocation4], 1
    %239 = vsyncpa [#allocation12], 1

</llo_original>
